<compile_context>
chip_gen: v5e
topology: v5e:2x2
jax: 0.10.0
libtpu: 0.0.40
codegen_flags: <defaults>
</compile_context>

<pallas_src>
import functools

import jax
import jax.numpy as jnp
from jax.experimental import pallas as pl
from jax.experimental.pallas import tpu as pltpu


_LANES = 512            # lane-dense minor dim (multiple of 128)
_MAX_BLOCK_ROWS = 1024  # 1024 x 512 f32 = 2 MiB per input block
_PAD_LOGIT = -1.0e4     # representable in bf16/f32; yields exactly-zero loss


def _round_up(x, m):
    return (x + m - 1) // m * m


def _focal_tile_loss(x, t, alpha, gamma):
    """Per-element focal loss on an f32 tile (matches the PyTorch module)."""
    # Stable BCE-with-logits: max(x,0) - x*t + log1p(exp(-|x|)).
    e = jnp.exp(-jnp.abs(x))                           # shared EUP exp
    bce = jnp.maximum(x, 0.0) - x * t + jnp.log1p(e)   # EUP log
    # sigmoid(x) reusing e (exact divide; kernel is HBM-bound so it is free):
    inv = 1.0 / (1.0 + e)
    p = jnp.where(x >= 0.0, inv, e * inv)

    # Exact PyTorch formulation — also supports soft (non-binary) targets.
    p_t = p * t + (1.0 - p) * (1.0 - t)
    alpha_factor = alpha * t + (1.0 - alpha) * (1.0 - t)

    pt1 = jnp.maximum(1.0 - p_t, 0.0)                  # clamp tiny negatives
    g = float(gamma)
    if g == int(g) and int(g) >= 0:
        modulating = pt1 ** int(g)                     # integer_pow -> muls
    else:
        modulating = pt1 ** jnp.float32(g)             # non-integer fallback
    return alpha_factor * modulating * bce


def _focal_sum_kernel(x_ref, t_ref, out_ref, acc_ref, *,
                      alpha, gamma, rows_valid, needs_row_mask):
    i = pl.program_id(0)
    block_rows = x_ref.shape[0]

    x = x_ref[...].astype(jnp.float32)
    t = t_ref[...].astype(jnp.float32)
    loss = _focal_tile_loss(x, t, alpha, gamma)

    if needs_row_mask:
        # Last grid block may extend past the array: mask garbage rows.
        row = jax.lax.broadcasted_iota(jnp.int32, loss.shape, 0) + i * block_rows
        loss = jnp.where(row < rows_valid, loss, 0.0)

    @pl.when(i == 0)
    def _init():
        acc_ref[...] = jnp.zeros_like(acc_ref)

    acc_ref[...] += loss                               # pure VPU add per step

    @pl.when(i == pl.num_programs(0) - 1)
    def _finalize():
        total = jnp.sum(acc_ref[...])                  # single XLU reduce
        out_ref[...] = jnp.full(out_ref.shape, total, dtype=out_ref.dtype)


def _focal_elem_kernel(x_ref, t_ref, out_ref, *, alpha, gamma):
    x = x_ref[...].astype(jnp.float32)
    t = t_ref[...].astype(jnp.float32)
    out_ref[...] = _focal_tile_loss(x, t, alpha, gamma).astype(out_ref.dtype)


def _lane_dense_view(a, pad_value):
    """(rows, _LANES) view.  Zero-copy when a.size % _LANES == 0; otherwise a
    minimal pad to the next 512 elements (fusable via allow_input_fusion)."""
    n = a.size
    rows = max(pl.cdiv(n, _LANES), 1)
    flat = a.reshape(-1)
    n_pad = rows * _LANES
    if n_pad != n:
        # Padded elements (logit=_PAD_LOGIT, target=0) give exactly-zero loss.
        flat = jnp.pad(flat, (0, n_pad - n), constant_values=pad_value)
    return flat.reshape(rows, _LANES), rows


def focal_loss(logits, targets, *, alpha=0.25, gamma=2.0, reduction="mean",
               max_block_rows=_MAX_BLOCK_ROWS):
    """Pallas implementation of FocalLoss.forward (mean / sum / none)."""
    assert logits.shape == targets.shape
    n = int(logits.size)

    x2d, rows = _lane_dense_view(logits, _PAD_LOGIT)
    t2d, _ = _lane_dense_view(targets, 0)

    block_rows = min(int(max_block_rows), _round_up(rows, 8))
    num_blocks = pl.cdiv(rows, block_rows)
    needs_row_mask = (num_blocks * block_rows != rows)

    elem_pad = rows * _LANES
    in_bytes = elem_pad * (x2d.dtype.itemsize + t2d.dtype.itemsize)
    vmem_limit = 40 * 1024 * 1024   # safe on v7x's 64 MiB physical VMEM too

    in_specs = [
        pl.BlockSpec((block_rows, _LANES), lambda i: (i, 0)),
        pl.BlockSpec((block_rows, _LANES), lambda i: (i, 0)),
    ]

    if reduction in ("mean", "sum"):
        kernel = functools.partial(
            _focal_sum_kernel, alpha=float(alpha), gamma=float(gamma),
            rows_valid=rows, needs_row_mask=needs_row_mask)
        out = pl.pallas_call(
            kernel,
            out_shape=jax.ShapeDtypeStruct((8, 128), jnp.float32),
            grid_spec=pltpu.PrefetchScalarGridSpec(
                num_scalar_prefetch=0,
                grid=(num_blocks,),
                in_specs=in_specs,
                out_specs=pl.BlockSpec((8, 128), lambda i: (0, 0)),
                scratch_shapes=[pltpu.VMEM((block_rows, _LANES), jnp.float32)],
            ),
            compiler_params=pltpu.CompilerParams(
                dimension_semantics=("arbitrary",),
                vmem_limit_bytes=vmem_limit,
                allow_input_fusion=[True, True],
            ),
            cost_estimate=pl.CostEstimate(
                flops=25 * elem_pad,
                transcendentals=2 * elem_pad,
                bytes_accessed=in_bytes + 8 * 128 * 4,
            ),
        )(x2d, t2d)
        total = out[0, 0]
        if reduction == "mean":
            return total / jnp.float32(n)
        return total

    if reduction == "none":
        kernel = functools.partial(
            _focal_elem_kernel, alpha=float(alpha), gamma=float(gamma))
        out = pl.pallas_call(
            kernel,
            out_shape=jax.ShapeDtypeStruct((rows, _LANES), logits.dtype),
            grid_spec=pltpu.PrefetchScalarGridSpec(
                num_scalar_prefetch=0,
                grid=(num_blocks,),
                in_specs=in_specs,
                out_specs=pl.BlockSpec((block_rows, _LANES), lambda i: (i, 0)),
            ),
            compiler_params=pltpu.CompilerParams(
                dimension_semantics=("parallel",),
                vmem_limit_bytes=vmem_limit,
                allow_input_fusion=[True, True],
            ),
            cost_estimate=pl.CostEstimate(
                flops=25 * elem_pad,
                transcendentals=2 * elem_pad,
                bytes_accessed=in_bytes + elem_pad * jnp.dtype(logits.dtype).itemsize,
            ),
        )(x2d, t2d)
        if elem_pad == n:
            return out.reshape(logits.shape)           # free bitcast reshape
        return out.reshape(-1)[:n].reshape(logits.shape)

    raise ValueError(f"unknown reduction: {reduction}")


def _focal_loss_ref(logits, targets, alpha=0.25, gamma=2.0):
    """Pure-JAX reference (elementwise, reduction='none')."""
    x = logits.astype(jnp.float32)
    t = targets.astype(jnp.float32)
    bce = jnp.maximum(x, 0.0) - x * t + jnp.log1p(jnp.exp(-jnp.abs(x)))
    p = jax.nn.sigmoid(x)
    p_t = p * t + (1.0 - p) * (1.0 - t)
    af = alpha * t + (1.0 - alpha) * (1.0 - t)
    return af * (1.0 - p_t) ** gamma * bce


if __name__ == "__main__":
    key = jax.random.PRNGKey(0)
    k1, k2, k3, k4, k5, k6 = jax.random.split(key, 6)

    # Small shape consistent with the module: (batch_size, num_labels).
    batch_size, num_labels = 2, 16
    logits = jax.random.normal(k1, (batch_size, num_labels), jnp.float32) * 2.0
    targets = (jax.random.uniform(k2, (batch_size, num_labels)) > 0.5).astype(jnp.float32)

    loss_mean = jax.block_until_ready(focal_loss(logits, targets, reduction="mean"))
    loss_sum = jax.block_until_ready(focal_loss(logits, targets, reduction="sum"))
    loss_none = jax.block_until_ready(focal_loss(logits, targets, reduction="none"))

    ref_none = _focal_loss_ref(logits, targets)
    assert jnp.allclose(loss_mean, ref_none.mean(), rtol=1e-4, atol=1e-6), \
        (loss_mean, ref_none.mean())
    assert jnp.allclose(loss_sum, ref_none.sum(), rtol=1e-4, atol=1e-6), \
        (loss_sum, ref_none.sum())
    assert jnp.allclose(loss_none, ref_none, rtol=1e-4, atol=1e-6)

    # Non-aligned shape with bf16 targets (lossless for 0/1 multi-hot, less DMA):
    # exercises the minimal 512-pad, the in-kernel ragged row mask, and the
    # dtype-agnostic input path.
    b2, l2 = 64, 257
    logits2 = jax.random.normal(k3, (b2, l2), jnp.float32) * 3.0
    targets2 = (jax.random.uniform(k4, (b2, l2)) > 0.7).astype(jnp.bfloat16)
    loss2 = jax.block_until_ready(focal_loss(logits2, targets2, reduction="mean"))
    ref2 = _focal_loss_ref(logits2, targets2).mean()
    assert jnp.allclose(loss2, ref2, rtol=1e-4, atol=1e-6), (loss2, ref2)

    # Aligned shape (zero-copy view, no pad) with a forced small block size:
    # exercises multi-block accumulation across the "arbitrary" grid axis.
    b3, l3 = 16, 512
    logits3 = jax.random.normal(k5, (b3, l3), jnp.float32)
    targets3 = (jax.random.uniform(k6, (b3, l3)) > 0.5).astype(jnp.float32)
    loss3 = jax.block_until_ready(
        focal_loss(logits3, targets3, reduction="sum", max_block_rows=8))
    ref3 = _focal_loss_ref(logits3, targets3).sum()
    assert jnp.allclose(loss3, ref3, rtol=1e-4, atol=1e-5), (loss3, ref3)

    print("KERNEL_OK")
</pallas_src>

<mosaic_0001>
module attributes {stable_mosaic.version = 11 : i64} {
  func.func @_focal_sum_kernel(%arg0: i32, %arg1: memref<8x512xf32, #tpu.memory_space<vmem>>, %arg2: memref<8x512xf32, #tpu.memory_space<vmem>>, %arg3: memref<8x128xf32, #tpu.memory_space<vmem>>, %arg4: memref<8x512xf32, #tpu.memory_space<vmem>>) attributes {dimension_semantics = [#tpu.dimension_semantics<arbitrary>], iteration_bounds = array<i64: 1>, scalar_prefetch = 0 : i64, scratch_operands = 1 : i64, tpu.core_type = #tpu.core_type<tc>, window_params = [{transform_indices = @transform_0, window_bounds = array<i64: 8, 512>}, {transform_indices = @transform_1, window_bounds = array<i64: 8, 512>}, {pipeline_mode = #tpu.pipeline_mode<synchronous>, transform_indices = @transform_2, window_bounds = array<i64: 8, 128>}]} {
    %c0 = arith.constant 0 : index
    %c0_0 = arith.constant 0 : index
    %0 = vector.load %arg1[%c0, %c0_0] : memref<8x512xf32, #tpu.memory_space<vmem>>, vector<8x512xf32>
    %c0_1 = arith.constant 0 : index
    %c0_2 = arith.constant 0 : index
    %1 = vector.load %arg2[%c0_1, %c0_2] : memref<8x512xf32, #tpu.memory_space<vmem>>, vector<8x512xf32>
    %2 = math.absf %0 : vector<8x512xf32>
    %cst = arith.constant 0.000000e+00 : f32
    %3 = vector.broadcast %cst : f32 to vector<8x512xf32>
    %4 = arith.subf %3, %2 : vector<8x512xf32>
    %5 = math.exp %4 : vector<8x512xf32>
    %cst_3 = arith.constant 0.000000e+00 : f32
    %6 = vector.broadcast %cst_3 : f32 to vector<8x512xf32>
    %7 = arith.maximumf %0, %6 : vector<8x512xf32>
    %8 = arith.mulf %0, %1 : vector<8x512xf32>
    %9 = arith.subf %7, %8 : vector<8x512xf32>
    %10 = math.log1p %5 : vector<8x512xf32>
    %11 = arith.addf %9, %10 : vector<8x512xf32>
    %cst_4 = arith.constant 1.000000e+00 : f32
    %12 = vector.broadcast %cst_4 : f32 to vector<8x512xf32>
    %13 = arith.addf %12, %5 : vector<8x512xf32>
    %cst_5 = arith.constant 1.000000e+00 : f32
    %14 = vector.broadcast %cst_5 : f32 to vector<8x512xf32>
    %15 = arith.divf %14, %13 : vector<8x512xf32>
    %cst_6 = arith.constant 0.000000e+00 : f32
    %16 = vector.broadcast %cst_6 : f32 to vector<8x512xf32>
    %17 = arith.cmpf oge, %0, %16 : vector<8x512xf32>
    %18 = arith.mulf %5, %15 : vector<8x512xf32>
    %19 = arith.select %17, %15, %18 : vector<8x512xi1>, vector<8x512xf32>
    %20 = arith.mulf %19, %1 : vector<8x512xf32>
    %cst_7 = arith.constant 1.000000e+00 : f32
    %21 = vector.broadcast %cst_7 : f32 to vector<8x512xf32>
    %22 = arith.subf %21, %19 : vector<8x512xf32>
    %cst_8 = arith.constant 1.000000e+00 : f32
    %23 = vector.broadcast %cst_8 : f32 to vector<8x512xf32>
    %24 = arith.subf %23, %1 : vector<8x512xf32>
    %25 = arith.mulf %22, %24 : vector<8x512xf32>
    %26 = arith.addf %20, %25 : vector<8x512xf32>
    %cst_9 = arith.constant 2.500000e-01 : f32
    %27 = vector.broadcast %cst_9 : f32 to vector<8x512xf32>
    %28 = arith.mulf %27, %1 : vector<8x512xf32>
    %cst_10 = arith.constant 1.000000e+00 : f32
    %29 = vector.broadcast %cst_10 : f32 to vector<8x512xf32>
    %30 = arith.subf %29, %1 : vector<8x512xf32>
    %cst_11 = arith.constant 7.500000e-01 : f32
    %31 = vector.broadcast %cst_11 : f32 to vector<8x512xf32>
    %32 = arith.mulf %31, %30 : vector<8x512xf32>
    %33 = arith.addf %28, %32 : vector<8x512xf32>
    %cst_12 = arith.constant 1.000000e+00 : f32
    %34 = vector.broadcast %cst_12 : f32 to vector<8x512xf32>
    %35 = arith.subf %34, %26 : vector<8x512xf32>
    %cst_13 = arith.constant 0.000000e+00 : f32
    %36 = vector.broadcast %cst_13 : f32 to vector<8x512xf32>
    %37 = arith.maximumf %35, %36 : vector<8x512xf32>
    %38 = arith.mulf %37, %37 : vector<8x512xf32>
    %39 = arith.mulf %33, %38 : vector<8x512xf32>
    %40 = arith.mulf %39, %11 : vector<8x512xf32>
    %41 = tpu.iota {dimensions = array<i32: 0>} : vector<8x512xi32>
    %c8_i32 = arith.constant 8 : i32
    %42 = arith.muli %arg0, %c8_i32 : i32
    %43 = vector.broadcast %42 : i32 to vector<8x512xi32>
    %44 = arith.addi %41, %43 : vector<8x512xi32>
    %c1_i32 = arith.constant 1 : i32
    %45 = vector.broadcast %c1_i32 : i32 to vector<8x512xi32>
    %46 = arith.cmpi slt, %44, %45 : vector<8x512xi32>
    %cst_14 = arith.constant 0.000000e+00 : f32
    %47 = vector.broadcast %cst_14 : f32 to vector<8x512xf32>
    %48 = arith.select %46, %40, %47 : vector<8x512xi1>, vector<8x512xf32>
    %c0_i32 = arith.constant 0 : i32
    %49 = arith.cmpi eq, %arg0, %c0_i32 : i32
    %50 = arith.extui %49 : i1 to i32
    %c0_i32_15 = arith.constant 0 : i32
    %51 = arith.cmpi ne, %50, %c0_i32_15 : i32
    scf.if %51 {
      %cst_22 = arith.constant 0.000000e+00 : f32
      %58 = vector.broadcast %cst_22 : f32 to vector<8x512xf32>
      %c0_23 = arith.constant 0 : index
      %c0_24 = arith.constant 0 : index
      %59 = vector.load %arg4[%c0_23, %c0_24] : memref<8x512xf32, #tpu.memory_space<vmem>>, vector<8x512xf32>
      tpu.vector_store %arg4[%c0_23, %c0_24], %58 {strides = array<i32>} : memref<8x512xf32, #tpu.memory_space<vmem>>, vector<8x512xf32>,
    } else {
    }
    %c0_16 = arith.constant 0 : index
    %c0_17 = arith.constant 0 : index
    %52 = vector.load %arg4[%c0_16, %c0_17] : memref<8x512xf32, #tpu.memory_space<vmem>>, vector<8x512xf32>
    %53 = arith.addf %52, %48 : vector<8x512xf32>
    %c0_18 = arith.constant 0 : index
    %c0_19 = arith.constant 0 : index
    %54 = vector.load %arg4[%c0_18, %c0_19] : memref<8x512xf32, #tpu.memory_space<vmem>>, vector<8x512xf32>
    tpu.vector_store %arg4[%c0_18, %c0_19], %53 {strides = array<i32>} : memref<8x512xf32, #tpu.memory_space<vmem>>, vector<8x512xf32>,
    %c0_i32_20 = arith.constant 0 : i32
    %55 = arith.cmpi eq, %arg0, %c0_i32_20 : i32
    %56 = arith.extui %55 : i1 to i32
    %c0_i32_21 = arith.constant 0 : i32
    %57 = arith.cmpi ne, %56, %c0_i32_21 : i32
    scf.if %57 {
      %c0_22 = arith.constant 0 : index
      %c0_23 = arith.constant 0 : index
      %58 = vector.load %arg4[%c0_22, %c0_23] : memref<8x512xf32, #tpu.memory_space<vmem>>, vector<8x512xf32>
      %59 = vector.shape_cast %58 : vector<8x512xf32> to vector<1x8x512xf32>
      %cst_24 = arith.constant dense<0.000000e+00> : vector<1xf32>
      %60 = vector.multi_reduction <add>, %59, %cst_24 [1, 2] : vector<1x8x512xf32> to vector<1xf32>
      %61 = vector.shape_cast %60 : vector<1xf32> to vector<1x1x1xf32>
      %62 = vector.extract %61[0, 0, 0] : f32 from vector<1x1x1xf32>
      %63 = vector.broadcast %62 : f32 to vector<8x128xf32>
      %c0_25 = arith.constant 0 : index
      %c0_26 = arith.constant 0 : index
      %64 = vector.load %arg3[%c0_25, %c0_26] : memref<8x128xf32, #tpu.memory_space<vmem>>, vector<8x128xf32>
      tpu.vector_store %arg3[%c0_25, %c0_26], %63 {strides = array<i32>} : memref<8x128xf32, #tpu.memory_space<vmem>>, vector<8x128xf32>,
    } else {
    }
    return
  }
  func.func @transform_0(%arg0: i32) -> (i32, i32) {
    %c0_i32 = arith.constant 0 : i32
    %c0_i32_0 = arith.constant 0 : i32
    return %arg0, %c0_i32 : i32, i32
  }
  func.func @transform_1(%arg0: i32) -> (i32, i32) {
    %c0_i32 = arith.constant 0 : i32
    %c0_i32_0 = arith.constant 0 : i32
    return %arg0, %c0_i32 : i32, i32
  }
  func.func @transform_2(%arg0: i32) -> (i32, i32) {
    %c0_i32 = arith.constant 0 : i32
    %c0_i32_0 = arith.constant 0 : i32
    %c0_i32_1 = arith.constant 0 : i32
    return %c0_i32, %c0_i32_0 : i32, i32
  }
}

</mosaic_0001>

<llo_original>
// kernel: tpu_custom_call.1
$region0: #{tpu_custom_call.1}
  #allocation0 [shape = 'u32[]', space=smem, size = 0x4, offset = 0x4, fixed_abs, tag = 'smem constant byte address 0x4 - core index']
  #allocation1 [shape = 'u32[72,128]{1,0:T(1,128)}', space=vmem, size = 0x9000, scoped, tag = 'internal scratch']
  #allocation2 [shape = 'f32[8,512]{1,0:T(8,128)}', space=vmem, size = 0x4000, scoped, tag = 'scratch operand']
  %s0 = inlined_call_operand.hbm [shape: f32[1,512], index: 0, kind: input, shape index: {}]
  %s1 = inlined_call_operand.hbm [shape: f32[1,512], index: 1, kind: input, shape index: {}]
  %s2 = inlined_call_operand.hbm [shape: f32[8,128], index: 2, kind: output, shape index: {}]
  %s3 = sld [smem:[#allocation0]]
  $region34: #{tpu_custom_call.1} parent=0
    _
  %s5 = ssub.s32 1, %s3
  %s6 = scalar_select 0, %s5, %s3
  $region1: #{tpu_custom_call.1} parent=0
    #allocation3 [shape = 'u8[16384]{0}', space=vmem, size = 0x4000, scoped, tag = 'input window, operand 0, single buffered']
    #allocation4 [shape = 's32[1]{0}', space=sflag, size = 0x4, scoped, tag = 'scoped memory for tpu_custom_call.1']
    #allocation5 [shape = 's32[1]{0}', space=sflag, size = 0x4, scoped, tag = 'scoped memory for tpu_custom_call.1']
    #allocation6 [shape = 'u8[16384]{0}', space=vmem, size = 0x4000, scoped, tag = 'input window, operand 1, single buffered']
    #allocation7 [shape = 's32[1]{0}', space=sflag, size = 0x4, scoped, tag = 'scoped memory for tpu_custom_call.1']
    #allocation8 [shape = 'u8[4096]{0}', space=vmem, size = 0x1000, scoped, tag = 'output window, operand 0, single buffered']
    %7 = vsyncpa [#allocation4], 0
    %8 = vsyncpa [#allocation7], 0
    %9 = vsyncpa [#allocation5], 0
    // Predicated region
    $region2: #{tpu_custom_call.1} parent=1 // pred_check
      _
    $region3: #{tpu_custom_call.1} parent=1 // pred_check_branch
      %11 = sbr.rel (0) target = $region5
    $region4: #{tpu_custom_call.1} parent=1 // pred_region
      %13 = vsyncadd [#allocation4], 448
      %s14 = sshll.u32 %s0, 4
      %s15 = int_to_ptr.hbm [resolvable:$true] %s14
      %s16 = sshll.u32 [#allocation3], 4
      %s17 = int_to_ptr.vmem [resolvable:$true] %s16
      %22 = dma.hbm_to_vmem [thread:$0]  %s15, 64, %s17, [#allocation4], 64, 64, 4
    $region5: #{tpu_custom_call.1} parent=1 // pred_fallthru
      _
    // Predicated region
    $region6: #{tpu_custom_call.1} parent=1 // pred_check
      _
    $region7: #{tpu_custom_call.1} parent=1 // pred_check_branch
      %24 = sbr.rel (0) target = $region9
    $region8: #{tpu_custom_call.1} parent=1 // pred_region
      %26 = vsyncadd [#allocation7], 448
      %s27 = sshll.u32 %s1, 4
      %s28 = int_to_ptr.hbm [resolvable:$true] %s27
      %s29 = sshll.u32 [#allocation6], 4
      %s30 = int_to_ptr.vmem [resolvable:$true] %s29
      %35 = dma.hbm_to_vmem [thread:$0]  %s28, 64, %s30, [#allocation7], 64, 64, 4
    $region9: #{tpu_custom_call.1} parent=1 // pred_fallthru
      _
    // Predicated region
    $region10: #{tpu_custom_call.1} parent=1 // pred_check
      _
    $region11: #{tpu_custom_call.1} parent=1 // pred_check_branch
      %37 = sbr.rel (0) target = $region13
    $region12: #{tpu_custom_call.1} parent=1 // pred_region
      %39 = dma.done [#allocation4], 512
    $region13: #{tpu_custom_call.1} parent=1 // pred_fallthru
      _
    // Predicated region
    $region14: #{tpu_custom_call.1} parent=1 // pred_check
      _
    $region15: #{tpu_custom_call.1} parent=1 // pred_check_branch
      %41 = sbr.rel (0) target = $region17
    $region16: #{tpu_custom_call.1} parent=1 // pred_region
      %43 = dma.done [#allocation7], 512
    $region17: #{tpu_custom_call.1} parent=1 // pred_fallthru
      _
    %v44 = vld [vmem:[#allocation3] sm:$0xf]
    %v45 = vld [vmem:[#allocation3 + $0x4] sm:$0xf]
    %v46 = vld [vmem:[#allocation3 + $0x8] sm:$0xf]
    %v47 = vld [vmem:[#allocation3 + $0xc] sm:$0xf]
    %v48 = vld [vmem:[#allocation3 + $0x10] sm:$0xf]
    %v49 = vld [vmem:[#allocation3 + $0x14] sm:$0xf]
    %v50 = vld [vmem:[#allocation3 + $0x18] sm:$0xf]
    %v51 = vld [vmem:[#allocation3 + $0x1c] sm:$0xf]
    %v52 = vld [vmem:[#allocation6] sm:$0xf]
    %v53 = vld [vmem:[#allocation6 + $0x4] sm:$0xf]
    %v54 = vld [vmem:[#allocation6 + $0x8] sm:$0xf]
    %v55 = vld [vmem:[#allocation6 + $0xc] sm:$0xf]
    %v56 = vld [vmem:[#allocation6 + $0x10] sm:$0xf]
    %v57 = vld [vmem:[#allocation6 + $0x14] sm:$0xf]
    %v58 = vld [vmem:[#allocation6 + $0x18] sm:$0xf]
    %v59 = vld [vmem:[#allocation6 + $0x1c] sm:$0xf]
    %v60 = vand.u32 2147483647, %v44
    %v61 = vand.u32 2147483647, %v45
    %v62 = vand.u32 2147483647, %v46
    %v63 = vand.u32 2147483647, %v47
    %v64 = vand.u32 2147483647, %v48
    %v65 = vand.u32 2147483647, %v49
    %v66 = vand.u32 2147483647, %v50
    %v67 = vand.u32 2147483647, %v51
    %v68 = vsub.f32 0.0, %v60
    %v69 = vsub.f32 0.0, %v61
    %v70 = vsub.f32 0.0, %v62
    %v71 = vsub.f32 0.0, %v63
    %v72 = vsub.f32 0.0, %v64
    %v73 = vsub.f32 0.0, %v65
    %v74 = vsub.f32 0.0, %v66
    %v75 = vsub.f32 0.0, %v67
    %v76 = vmul.f32 %v68, 1.442695
    %v77 = vpow.pop %v76
    %v78 = vmul.f32 %v69, 1.442695
    %v79 = vpow.pop %v78
    %v80 = vmul.f32 %v70, 1.442695
    %v81 = vpow.pop %v80
    %v82 = vmul.f32 %v71, 1.442695
    %v83 = vpow.pop %v82
    %v84 = vmul.f32 %v72, 1.442695
    %v85 = vpow.pop %v84
    %v86 = vmul.f32 %v73, 1.442695
    %v87 = vpow.pop %v86
    %v88 = vmul.f32 %v74, 1.442695
    %v89 = vpow.pop %v88
    %v90 = vmul.f32 %v75, 1.442695
    %v91 = vpow.pop %v90
    %v92 = vmax.f32 %v44, 0.0
    %v93 = vmax.f32 %v45, 0.0
    %v94 = vmax.f32 %v46, 0.0
    %v95 = vmax.f32 %v47, 0.0
    %v96 = vmax.f32 %v48, 0.0
    %v97 = vmax.f32 %v49, 0.0
    %v98 = vmax.f32 %v50, 0.0
    %v99 = vmax.f32 %v51, 0.0
    %v100 = vmul.f32 %v44, %v52
    %v101 = vmul.f32 %v45, %v53
    %v102 = vmul.f32 %v46, %v54
    %v103 = vmul.f32 %v47, %v55
    %v104 = vmul.f32 %v48, %v56
    %v105 = vmul.f32 %v49, %v57
    %v106 = vmul.f32 %v50, %v58
    %v107 = vmul.f32 %v51, %v59
    %v108 = vsub.f32 %v92, %v100
    %v109 = vsub.f32 %v93, %v101
    %v110 = vsub.f32 %v94, %v102
    %v111 = vsub.f32 %v95, %v103
    %v112 = vsub.f32 %v96, %v104
    %v113 = vsub.f32 %v97, %v105
    %v114 = vsub.f32 %v98, %v106
    %v115 = vsub.f32 %v99, %v107
    %v116 = vadd.f32 %v77, 1.0
    %v117 = vlog2.pop %v116
    %v118 = vmul.f32 %v117, 0.6931472
    %v119 = vmul.f32 -0.5, %v77
    %v120 = vadd.f32 %v119, 1.0
    %v121 = vmul.f32 %v120, %v77
    %v122 = vand.u32 2147483647, %v77
    %vm123 = vcmp.lt.f32.partialorder %v122, 0.0004427343
    %v124 = vsel %vm123, %v121, %v118
    %v125 = vadd.f32 %v79, 1.0
    %v126 = vlog2.pop %v125
    %v127 = vmul.f32 %v126, 0.6931472
    %v128 = vmul.f32 -0.5, %v79
    %v129 = vadd.f32 %v128, 1.0
    %v130 = vmul.f32 %v129, %v79
    %v131 = vand.u32 2147483647, %v79
    %vm132 = vcmp.lt.f32.partialorder %v131, 0.0004427343
    %v133 = vsel %vm132, %v130, %v127
    %v134 = vadd.f32 %v81, 1.0
    %v135 = vlog2.pop %v134
    %v136 = vmul.f32 %v135, 0.6931472
    %v137 = vmul.f32 -0.5, %v81
    %v138 = vadd.f32 %v137, 1.0
    %v139 = vmul.f32 %v138, %v81
    %v140 = vand.u32 2147483647, %v81
    %vm141 = vcmp.lt.f32.partialorder %v140, 0.0004427343
    %v142 = vsel %vm141, %v139, %v136
    %v143 = vadd.f32 %v83, 1.0
    %v144 = vlog2.pop %v143
    %v145 = vmul.f32 %v144, 0.6931472
    %v146 = vmul.f32 -0.5, %v83
    %v147 = vadd.f32 %v146, 1.0
    %v148 = vmul.f32 %v147, %v83
    %v149 = vand.u32 2147483647, %v83
    %vm150 = vcmp.lt.f32.partialorder %v149, 0.0004427343
    %v151 = vsel %vm150, %v148, %v145
    %v152 = vadd.f32 %v85, 1.0
    %v153 = vlog2.pop %v152
    %v154 = vmul.f32 %v153, 0.6931472
    %v155 = vmul.f32 -0.5, %v85
    %v156 = vadd.f32 %v155, 1.0
    %v157 = vmul.f32 %v156, %v85
    %v158 = vand.u32 2147483647, %v85
    %vm159 = vcmp.lt.f32.partialorder %v158, 0.0004427343
    %v160 = vsel %vm159, %v157, %v154
    %v161 = vadd.f32 %v87, 1.0
    %v162 = vlog2.pop %v161
    %v163 = vmul.f32 %v162, 0.6931472
    %v164 = vmul.f32 -0.5, %v87
    %v165 = vadd.f32 %v164, 1.0
    %v166 = vmul.f32 %v165, %v87
    %v167 = vand.u32 2147483647, %v87
    %vm168 = vcmp.lt.f32.partialorder %v167, 0.0004427343
    %v169 = vsel %vm168, %v166, %v163
    %v170 = vadd.f32 %v89, 1.0
    %v171 = vlog2.pop %v170
    %v172 = vmul.f32 %v171, 0.6931472
    %v173 = vmul.f32 -0.5, %v89
    %v174 = vadd.f32 %v173, 1.0
    %v175 = vmul.f32 %v174, %v89
    %v176 = vand.u32 2147483647, %v89
    %vm177 = vcmp.lt.f32.partialorder %v176, 0.0004427343
    %v178 = vsel %vm177, %v175, %v172
    %v179 = vadd.f32 %v91, 1.0
    %v180 = vlog2.pop %v179
    %v181 = vmul.f32 %v180, 0.6931472
    %v182 = vmul.f32 -0.5, %v91
    %v183 = vadd.f32 %v182, 1.0
    %v184 = vmul.f32 %v183, %v91
    %v185 = vand.u32 2147483647, %v91
    %vm186 = vcmp.lt.f32.partialorder %v185, 0.0004427343
    %v187 = vsel %vm186, %v184, %v181
    %v188 = vadd.f32 %v108, %v124
    %v189 = vadd.f32 %v109, %v133
    %v190 = vadd.f32 %v110, %v142
    %v191 = vadd.f32 %v111, %v151
    %v192 = vadd.f32 %v112, %v160
    %v193 = vadd.f32 %v113, %v169
    %v194 = vadd.f32 %v114, %v178
    %v195 = vadd.f32 %v115, %v187
    %v196 = vadd.f32 %v77, 1.0
    %v197 = vadd.f32 %v79, 1.0
    %v198 = vadd.f32 %v81, 1.0
    %v199 = vadd.f32 %v83, 1.0
    %v200 = vadd.f32 %v85, 1.0
    %v201 = vadd.f32 %v87, 1.0
    %v202 = vadd.f32 %v89, 1.0
    %v203 = vadd.f32 %v91, 1.0
    %v204 = vrcp.pop %v196
    %v205 = vmul.f32 %v196, %v204
    %v206 = vsub.f32 1.0, %v205
    %v207 = vmul.f32 %v204, %v206
    %v208 = vadd.f32 %v204, %v207
    %vm209 = vweird.f32 %v196
    %vm210 = vweird.f32 %v204
    %vm211 = vmor %vm209, %vm210
    %v212 = vsel %vm211, %v204, %v208
    %v213 = vand.u32 2147483647, %v196
    %vm214 = vcmp.eq.f32.partialorder %v213, 8.507059e+37
    %v215 = vand.u32 %v196, 2147483648
    %v216 = vor.u32 1.1754944e-38, %v215
    %v217 = vsel %vm214, %v216, %v212
    %v218 = vmul.f32 1.0, %v217
    %v219 = vrcp.pop %v197
    %v220 = vmul.f32 %v197, %v219
    %v221 = vsub.f32 1.0, %v220
    %v222 = vmul.f32 %v219, %v221
    %v223 = vadd.f32 %v219, %v222
    %vm224 = vweird.f32 %v197
    %vm225 = vweird.f32 %v219
    %vm226 = vmor %vm224, %vm225
    %v227 = vsel %vm226, %v219, %v223
    %v228 = vand.u32 2147483647, %v197
    %vm229 = vcmp.eq.f32.partialorder %v228, 8.507059e+37
    %v230 = vand.u32 %v197, 2147483648
    %v231 = vor.u32 1.1754944e-38, %v230
    %v232 = vsel %vm229, %v231, %v227
    %v233 = vmul.f32 1.0, %v232
    %v234 = vrcp.pop %v198
    %v235 = vmul.f32 %v198, %v234
    %v236 = vsub.f32 1.0, %v235
    %v237 = vmul.f32 %v234, %v236
    %v238 = vadd.f32 %v234, %v237
    %vm239 = vweird.f32 %v198
    %vm240 = vweird.f32 %v234
    %vm241 = vmor %vm239, %vm240
    %v242 = vsel %vm241, %v234, %v238
    %v243 = vand.u32 2147483647, %v198
    %vm244 = vcmp.eq.f32.partialorder %v243, 8.507059e+37
    %v245 = vand.u32 %v198, 2147483648
    %v246 = vor.u32 1.1754944e-38, %v245
    %v247 = vsel %vm244, %v246, %v242
    %v248 = vmul.f32 1.0, %v247
    %v249 = vrcp.pop %v199
    %v250 = vmul.f32 %v199, %v249
    %v251 = vsub.f32 1.0, %v250
    %v252 = vmul.f32 %v249, %v251
    %v253 = vadd.f32 %v249, %v252
    %vm254 = vweird.f32 %v199
    %vm255 = vweird.f32 %v249
    %vm256 = vmor %vm254, %vm255
    %v257 = vsel %vm256, %v249, %v253
    %v258 = vand.u32 2147483647, %v199
    %vm259 = vcmp.eq.f32.partialorder %v258, 8.507059e+37
    %v260 = vand.u32 %v199, 2147483648
    %v261 = vor.u32 1.1754944e-38, %v260
    %v262 = vsel %vm259, %v261, %v257
    %v263 = vmul.f32 1.0, %v262
    %v264 = vrcp.pop %v200
    %v265 = vmul.f32 %v200, %v264
    %v266 = vsub.f32 1.0, %v265
    %v267 = vmul.f32 %v264, %v266
    %v268 = vadd.f32 %v264, %v267
    %vm269 = vweird.f32 %v200
    %vm270 = vweird.f32 %v264
    %vm271 = vmor %vm269, %vm270
    %v272 = vsel %vm271, %v264, %v268
    %v273 = vand.u32 2147483647, %v200
    %vm274 = vcmp.eq.f32.partialorder %v273, 8.507059e+37
    %v275 = vand.u32 %v200, 2147483648
    %v276 = vor.u32 1.1754944e-38, %v275
    %v277 = vsel %vm274, %v276, %v272
    %v278 = vmul.f32 1.0, %v277
    %v279 = vrcp.pop %v201
    %v280 = vmul.f32 %v201, %v279
    %v281 = vsub.f32 1.0, %v280
    %v282 = vmul.f32 %v279, %v281
    %v283 = vadd.f32 %v279, %v282
    %vm284 = vweird.f32 %v201
    %vm285 = vweird.f32 %v279
    %vm286 = vmor %vm284, %vm285
    %v287 = vsel %vm286, %v279, %v283
    %v288 = vand.u32 2147483647, %v201
    %vm289 = vcmp.eq.f32.partialorder %v288, 8.507059e+37
    %v290 = vand.u32 %v201, 2147483648
    %v291 = vor.u32 1.1754944e-38, %v290
    %v292 = vsel %vm289, %v291, %v287
    %v293 = vmul.f32 1.0, %v292
    %v294 = vrcp.pop %v202
    %v295 = vmul.f32 %v202, %v294
    %v296 = vsub.f32 1.0, %v295
    %v297 = vmul.f32 %v294, %v296
    %v298 = vadd.f32 %v294, %v297
    %vm299 = vweird.f32 %v202
    %vm300 = vweird.f32 %v294
    %vm301 = vmor %vm299, %vm300
    %v302 = vsel %vm301, %v294, %v298
    %v303 = vand.u32 2147483647, %v202
    %vm304 = vcmp.eq.f32.partialorder %v303, 8.507059e+37
    %v305 = vand.u32 %v202, 2147483648
    %v306 = vor.u32 1.1754944e-38, %v305
    %v307 = vsel %vm304, %v306, %v302
    %v308 = vmul.f32 1.0, %v307
    %v309 = vrcp.pop %v203
    %v310 = vmul.f32 %v203, %v309
    %v311 = vsub.f32 1.0, %v310
    %v312 = vmul.f32 %v309, %v311
    %v313 = vadd.f32 %v309, %v312
    %vm314 = vweird.f32 %v203
    %vm315 = vweird.f32 %v309
    %vm316 = vmor %vm314, %vm315
    %v317 = vsel %vm316, %v309, %v313
    %v318 = vand.u32 2147483647, %v203
    %vm319 = vcmp.eq.f32.partialorder %v318, 8.507059e+37
    %v320 = vand.u32 %v203, 2147483648
    %v321 = vor.u32 1.1754944e-38, %v320
    %v322 = vsel %vm319, %v321, %v317
    %v323 = vmul.f32 1.0, %v322
    %vm324 = vcmp.ge.f32.partialorder %v44, 0.0
    %vm325 = vcmp.ge.f32.partialorder %v45, 0.0
    %vm326 = vcmp.ge.f32.partialorder %v46, 0.0
    %vm327 = vcmp.ge.f32.partialorder %v47, 0.0
    %vm328 = vcmp.ge.f32.partialorder %v48, 0.0
    %vm329 = vcmp.ge.f32.partialorder %v49, 0.0
    %vm330 = vcmp.ge.f32.partialorder %v50, 0.0
    %vm331 = vcmp.ge.f32.partialorder %v51, 0.0
    %v332 = vmul.f32 %v77, %v218
    %v333 = vmul.f32 %v79, %v233
    %v334 = vmul.f32 %v81, %v248
    %v335 = vmul.f32 %v83, %v263
    %v336 = vmul.f32 %v85, %v278
    %v337 = vmul.f32 %v87, %v293
    %v338 = vmul.f32 %v89, %v308
    %v339 = vmul.f32 %v91, %v323
    %v340 = vsel %vm324, %v218, %v332
    %v341 = vsel %vm325, %v233, %v333
    %v342 = vsel %vm326, %v248, %v334
    %v343 = vsel %vm327, %v263, %v335
    %v344 = vsel %vm328, %v278, %v336
    %v345 = vsel %vm329, %v293, %v337
    %v346 = vsel %vm330, %v308, %v338
    %v347 = vsel %vm331, %v323, %v339
    %v348 = vmul.f32 %v340, %v52
    %v349 = vmul.f32 %v341, %v53
    %v350 = vmul.f32 %v342, %v54
    %v351 = vmul.f32 %v343, %v55
    %v352 = vmul.f32 %v344, %v56
    %v353 = vmul.f32 %v345, %v57
    %v354 = vmul.f32 %v346, %v58
    %v355 = vmul.f32 %v347, %v59
    %v356 = vsub.f32 1.0, %v340
    %v357 = vsub.f32 1.0, %v341
    %v358 = vsub.f32 1.0, %v342
    %v359 = vsub.f32 1.0, %v343
    %v360 = vsub.f32 1.0, %v344
    %v361 = vsub.f32 1.0, %v345
    %v362 = vsub.f32 1.0, %v346
    %v363 = vsub.f32 1.0, %v347
    %v364 = vsub.f32 1.0, %v52
    %v365 = vsub.f32 1.0, %v53
    %v366 = vsub.f32 1.0, %v54
    %v367 = vsub.f32 1.0, %v55
    %v368 = vsub.f32 1.0, %v56
    %v369 = vsub.f32 1.0, %v57
    %v370 = vsub.f32 1.0, %v58
    %v371 = vsub.f32 1.0, %v59
    %v372 = vmul.f32 %v356, %v364
    %v373 = vmul.f32 %v357, %v365
    %v374 = vmul.f32 %v358, %v366
    %v375 = vmul.f32 %v359, %v367
    %v376 = vmul.f32 %v360, %v368
    %v377 = vmul.f32 %v361, %v369
    %v378 = vmul.f32 %v362, %v370
    %v379 = vmul.f32 %v363, %v371
    %v380 = vadd.f32 %v348, %v372
    %v381 = vadd.f32 %v349, %v373
    %v382 = vadd.f32 %v350, %v374
    %v383 = vadd.f32 %v351, %v375
    %v384 = vadd.f32 %v352, %v376
    %v385 = vadd.f32 %v353, %v377
    %v386 = vadd.f32 %v354, %v378
    %v387 = vadd.f32 %v355, %v379
    %v388 = vmul.f32 %v52, 0.25
    %v389 = vmul.f32 %v53, 0.25
    %v390 = vmul.f32 %v54, 0.25
    %v391 = vmul.f32 %v55, 0.25
    %v392 = vmul.f32 %v56, 0.25
    %v393 = vmul.f32 %v57, 0.25
    %v394 = vmul.f32 %v58, 0.25
    %v395 = vmul.f32 %v59, 0.25
    %v396 = vmul.f32 %v364, 0.75
    %v397 = vmul.f32 %v365, 0.75
    %v398 = vmul.f32 %v366, 0.75
    %v399 = vmul.f32 %v367, 0.75
    %v400 = vmul.f32 %v368, 0.75
    %v401 = vmul.f32 %v369, 0.75
    %v402 = vmul.f32 %v370, 0.75
    %v403 = vmul.f32 %v371, 0.75
    %v404 = vadd.f32 %v388, %v396
    %v405 = vadd.f32 %v389, %v397
    %v406 = vadd.f32 %v390, %v398
    %v407 = vadd.f32 %v391, %v399
    %v408 = vadd.f32 %v392, %v400
    %v409 = vadd.f32 %v393, %v401
    %v410 = vadd.f32 %v394, %v402
    %v411 = vadd.f32 %v395, %v403
    %v412 = vsub.f32 1.0, %v380
    %v413 = vsub.f32 1.0, %v381
    %v414 = vsub.f32 1.0, %v382
    %v415 = vsub.f32 1.0, %v383
    %v416 = vsub.f32 1.0, %v384
    %v417 = vsub.f32 1.0, %v385
    %v418 = vsub.f32 1.0, %v386
    %v419 = vsub.f32 1.0, %v387
    %v420 = vmax.f32 %v412, 0.0
    %v421 = vmax.f32 %v413, 0.0
    %v422 = vmax.f32 %v414, 0.0
    %v423 = vmax.f32 %v415, 0.0
    %v424 = vmax.f32 %v416, 0.0
    %v425 = vmax.f32 %v417, 0.0
    %v426 = vmax.f32 %v418, 0.0
    %v427 = vmax.f32 %v419, 0.0
    %v428 = vmul.f32 %v420, %v420
    %v429 = vmul.f32 %v421, %v421
    %v430 = vmul.f32 %v422, %v422
    %v431 = vmul.f32 %v423, %v423
    %v432 = vmul.f32 %v424, %v424
    %v433 = vmul.f32 %v425, %v425
    %v434 = vmul.f32 %v426, %v426
    %v435 = vmul.f32 %v427, %v427
    %v436 = vmul.f32 %v404, %v428
    %v437 = vmul.f32 %v405, %v429
    %v438 = vmul.f32 %v406, %v430
    %v439 = vmul.f32 %v407, %v431
    %v440 = vmul.f32 %v408, %v432
    %v441 = vmul.f32 %v409, %v433
    %v442 = vmul.f32 %v410, %v434
    %v443 = vmul.f32 %v411, %v435
    %v444 = vmul.f32 %v436, %v188
    %v445 = vmul.f32 %v437, %v189
    %v446 = vmul.f32 %v438, %v190
    %v447 = vmul.f32 %v439, %v191
    %v448 = vmul.f32 %v440, %v192
    %v449 = vmul.f32 %v441, %v193
    %v450 = vmul.f32 %v442, %v194
    %v451 = vmul.f32 %v443, %v195
    %v452 = vlaneseq
    %v453 = vshrl.u32 %v452, 7
    %s454 = smul.u32 0, 8
    %v455 = vstv %s454
    %v456 = vadd.s32 %v453, %v455
    %vm457 = vcmp.lt.s32.totalorder %v456, 1
    %466 = vst [vmem:[#allocation1] ss:$9 sm:$0xff] %v444
    %s467 = scalar_lea.vmem [#allocation1], 1
    %468 = vst [vmem:[%s467] ss:$9 sm:$0xff] %v445
    %s469 = scalar_lea.vmem [#allocation1], 2
    %470 = vst [vmem:[%s469] ss:$9 sm:$0xff] %v446
    %s471 = scalar_lea.vmem [#allocation1], 3
    %472 = vst [vmem:[%s471] ss:$9 sm:$0xff] %v447
    %s473 = scalar_lea.vmem [#allocation1], 4
    %474 = vst [vmem:[%s473] ss:$9 sm:$0xff] %v448
    %s475 = scalar_lea.vmem [#allocation1], 5
    %476 = vst [vmem:[%s475] ss:$9 sm:$0xff] %v449
    %s477 = scalar_lea.vmem [#allocation1], 6
    %478 = vst [vmem:[%s477] ss:$9 sm:$0xff] %v450
    %s479 = scalar_lea.vmem [#allocation1], 7
    %480 = vst [vmem:[%s479] ss:$9 sm:$0xff] %v451
    %v481 = vld [vmem:[#allocation1] sm:$0xff]
    %v482 = vld [vmem:[#allocation1 + $0x9] sm:$0xff]
    %v483 = vld [vmem:[#allocation1 + $0x12] sm:$0xff]
    %v484 = vld [vmem:[#allocation1 + $0x1b] sm:$0xff]
    %v489 = vsel %vm457, %v481, 0.0
    %v490 = vsel %vm457, %v482, 0.0
    %v491 = vsel %vm457, %v483, 0.0
    %v492 = vsel %vm457, %v484, 0.0
    %p493 = scmp.eq.s32.totalorder 0, 0
    // Predicated region
    $region18: #{tpu_custom_call.1} parent=1 // pred_check
      %p494 = pneg %p493
    $region19: #{tpu_custom_call.1} parent=1 // pred_check_branch
      %496 = sbr.rel (%p494) target = $region21
    $region20: #{tpu_custom_call.1} parent=1 // pred_region
      %497 = vst [vmem:[#allocation2] sm:$0xff] 0.0
      %498 = vst [vmem:[#allocation2 + $0x8] sm:$0xff] 0.0
      %499 = vst [vmem:[#allocation2 + $0x10] sm:$0xff] 0.0
      %500 = vst [vmem:[#allocation2 + $0x18] sm:$0xff] 0.0
    $region21: #{tpu_custom_call.1} parent=1 // pred_fallthru
      _
    %v501 = vld [vmem:[#allocation2] sm:$0xff]
    %v502 = vld [vmem:[#allocation2 + $0x8] sm:$0xff]
    %v503 = vld [vmem:[#allocation2 + $0x10] sm:$0xff]
    %v504 = vld [vmem:[#allocation2 + $0x18] sm:$0xff]
    %v505 = vadd.f32 %v501, %v489
    %v506 = vadd.f32 %v502, %v490
    %v507 = vadd.f32 %v503, %v491
    %v508 = vadd.f32 %v504, %v492
    %509 = vst [vmem:[#allocation2] sm:$0xff] %v505
    %510 = vst [vmem:[#allocation2 + $0x8] sm:$0xff] %v506
    %511 = vst [vmem:[#allocation2 + $0x10] sm:$0xff] %v507
    %512 = vst [vmem:[#allocation2 + $0x18] sm:$0xff] %v508
    // Predicated region
    $region22: #{tpu_custom_call.1} parent=1 // pred_check
      %p513 = pneg %p493
    $region23: #{tpu_custom_call.1} parent=1 // pred_check_branch
      %515 = sbr.rel (%p513) target = $region25
    $region24: #{tpu_custom_call.1} parent=1 // pred_region
      %v516 = vld [vmem:[#allocation2] sm:$0xff]
      %v517 = vld [vmem:[#allocation2 + $0x8] sm:$0xff]
      %v518 = vld [vmem:[#allocation2 + $0x10] sm:$0xff]
      %v519 = vld [vmem:[#allocation2 + $0x18] sm:$0xff]
      %v520 = vadd.f32 %v516, %v517
      %v521 = vadd.f32 %v520, %v518
      %v522 = vadd.f32 %v521, %v519
      %523 = vadd.xlane.f32.xlu0 %v522
      %v524 = vpop.xlane.xlu0 %523
      %v525 = vrot.slane %v524, 4
      %v526 = vadd.f32 %v524, %v525
      %v527 = vrot.slane %v526, 2
      %v528 = vadd.f32 %v526, %v527
      %v529 = vrot.slane %v528, 1
      %v530 = vadd.f32 %v528, %v529
      %s531 = vtos %v530
      %v532 = vstv %s531
      %533 = vst [vmem:[#allocation8] sm:$0xff] %v532
    $region25: #{tpu_custom_call.1} parent=1 // pred_fallthru
      _
    // Predicated region
    $region26: #{tpu_custom_call.1} parent=1 // pred_check
      _
    $region27: #{tpu_custom_call.1} parent=1 // pred_check_branch
      %535 = sbr.rel (0) target = $region29
    $region28: #{tpu_custom_call.1} parent=1 // pred_region
      %537 = vsyncadd [#allocation5], 0
      %s539 = sshll.u32 [#allocation8], 4
      %s540 = int_to_ptr.vmem [resolvable:$true] %s539
      %s541 = sshll.u32 %s2, 4
      %s542 = int_to_ptr.hbm [resolvable:$true] %s541
      %544 = dma.vmem_to_hbm [thread:$0]  %s540, 128, %s542, [#allocation5]
    $region29: #{tpu_custom_call.1} parent=1 // pred_fallthru
      _
    // Predicated region
    $region30: #{tpu_custom_call.1} parent=1 // pred_check
      _
    $region31: #{tpu_custom_call.1} parent=1 // pred_check_branch
      %546 = sbr.rel (0) target = $region33
    $region32: #{tpu_custom_call.1} parent=1 // pred_region
      %548 = dma.done [#allocation5], 128
    $region33: #{tpu_custom_call.1} parent=1 // pred_fallthru
      _
    %549 = vsyncpa [#allocation4], 1
    %550 = vsyncpa [#allocation7], 1
    %551 = vsyncpa [#allocation5], 1

</llo_original>
